<compile_context>
chip_gen: v5e
topology: v5e:2x2
jax: 0.10.0
libtpu: 0.0.40
codegen_flags: <defaults>
</compile_context>

<pallas_src>
import functools
import math

import jax
import jax.numpy as jnp
from jax.experimental import pallas as pl
from jax.experimental.pallas import tpu as pltpu

NEG_SLOPE = 0.01       # F.leaky_relu default
NEG_BIG = -1e30        # finite "masked" logit (safer than -inf)


def _leaky_relu(x):
    return jnp.where(x >= 0, x, NEG_SLOPE * x)


def _sigmoid(x):
    return 1.0 / (1.0 + jnp.exp(-x))


# ----------------------------------------------------------------------------
# Kernel 1 (prep): embedding Linear + leaky_relu for x1/x2 (one flat matmul over
# both halves), fused bmm kept in VMEM, and the encoder input-to-hidden gate
# precompute hoisted out of the recurrence.  Seq-major outputs emitted directly.
# ----------------------------------------------------------------------------
def prep_kernel(x_ref, wemb_ref, bemb_ref, wih_ref, benc_ref,
                x1e_ref, x2e_ref, xg_ref):
    B, D, twoL = x_ref.shape
    L = twoL // 2
    E = wemb_ref.shape[1]
    G = wih_ref.shape[1]                                   # 4H

    # [B, D, 2L] -> [B, 2L, D] (in-VMEM minor-dim swap, no wrapper transpose)
    xt = jnp.transpose(x_ref[...], (0, 2, 1)).reshape(B * twoL, D)
    e_all = _leaky_relu(
        jnp.dot(xt.astype(jnp.bfloat16), wemb_ref[...],
                preferred_element_type=jnp.float32) + bemb_ref[...]
    ).reshape(B, twoL, E)                                  # f32
    e1 = e_all[:, :L, :]                                   # [B, L, E]
    e2 = e_all[:, L:, :]                                   # [B, L, E]

    x1e_ref[...] = jnp.transpose(e1, (1, 0, 2)).astype(jnp.bfloat16)   # [L,B,E]
    x2e_ref[...] = e2.astype(jnp.bfloat16)                             # [B,L,E]

    # fused[b,l,m] = e1[b,l]·e2[b,m]  (never written to HBM)
    fused = jnp.einsum('ble,bme->blm',
                       e1.astype(jnp.bfloat16), e2.astype(jnp.bfloat16),
                       preferred_element_type=jnp.float32)             # [B,L,L]
    # hoisted encoder X @ W_ih (+ both biases) for all timesteps at once
    xg = (jnp.dot(fused.reshape(B * L, L).astype(jnp.bfloat16), wih_ref[...],
                  preferred_element_type=jnp.float32)
          + benc_ref[...]).reshape(B, L, G)
    xg_ref[...] = jnp.transpose(xg, (1, 0, 2))                          # [L,B,4H]


def prep_embed_fuse(x_raw, w_emb, b_emb, w_ih_enc, b_enc):
    B, D, twoL = x_raw.shape
    L = twoL // 2
    E = w_emb.shape[1]
    G = w_ih_enc.shape[1]
    vmem = pl.BlockSpec(memory_space=pltpu.MemorySpace.VMEM)
    return pl.pallas_call(
        prep_kernel,
        in_specs=[vmem] * 5,
        out_specs=[vmem] * 3,
        out_shape=[
            jax.ShapeDtypeStruct((L, B, E), jnp.bfloat16),
            jax.ShapeDtypeStruct((B, L, E), jnp.bfloat16),
            jax.ShapeDtypeStruct((L, B, G), jnp.float32),
        ],
        compiler_params=pltpu.CompilerParams(vmem_limit_bytes=64 * 1024 * 1024),
    )(x_raw, w_emb, b_emb, w_ih_enc, b_enc)


# ----------------------------------------------------------------------------
# Kernel 2 (encoder LSTM): only the bf16 hidden-to-hidden matmul is left on the
# sequential critical path; input gates arrive precomputed per step.
# ----------------------------------------------------------------------------
def encoder_lstm_kernel(xg_ref, h0_ref, c0_ref, whh_ref,
                        ctx_ref, hT_ref, cT_ref, h_s, c_s):
    H = h_s.shape[1]
    t = pl.program_id(0)

    @pl.when(t == 0)
    def _():
        h_s[...] = h0_ref[...]
        c_s[...] = c0_ref[...]

    gates = xg_ref[0] + jnp.dot(h_s[...].astype(jnp.bfloat16), whh_ref[...],
                                preferred_element_type=jnp.float32)     # [B,4H]
    # NOTE: gate slices are lane-granular at H=32; with H a multiple of 128
    # (production) they are lane-aligned and free.
    ig = _sigmoid(gates[:, 0:H])
    fg = _sigmoid(gates[:, H:2 * H])
    gg = jnp.tanh(gates[:, 2 * H:3 * H])
    og = _sigmoid(gates[:, 3 * H:4 * H])
    cy = fg * c_s[...] + ig * gg
    hy = og * jnp.tanh(cy)
    h_s[...] = hy
    c_s[...] = cy
    ctx_ref[0] = hy.astype(jnp.bfloat16)

    @pl.when(t == pl.num_programs(0) - 1)
    def _():
        hT_ref[...] = hy
        cT_ref[...] = cy


def run_encoder(xg_lb, h0, c0, whh):
    L, B, G = xg_lb.shape
    H = h0.shape[1]
    return pl.pallas_call(
        encoder_lstm_kernel,
        grid=(L,),
        in_specs=[
            pl.BlockSpec((1, B, G), lambda t: (t, 0, 0)),
            pl.BlockSpec((B, H), lambda t: (0, 0)),
            pl.BlockSpec((B, H), lambda t: (0, 0)),
            pl.BlockSpec((H, G), lambda t: (0, 0)),
        ],
        out_specs=[
            pl.BlockSpec((1, B, H), lambda t: (t, 0, 0)),
            pl.BlockSpec((B, H), lambda t: (0, 0)),
            pl.BlockSpec((B, H), lambda t: (0, 0)),
        ],
        out_shape=[
            jax.ShapeDtypeStruct((L, B, H), jnp.bfloat16),
            jax.ShapeDtypeStruct((B, H), jnp.float32),
            jax.ShapeDtypeStruct((B, H), jnp.float32),
        ],
        scratch_shapes=[pltpu.VMEM((B, H), jnp.float32),
                        pltpu.VMEM((B, H), jnp.float32)],
        compiler_params=pltpu.CompilerParams(
            dimension_semantics=("arbitrary",),
            vmem_limit_bytes=64 * 1024 * 1024),
    )(xg_lb, h0, c0, whh)


# ----------------------------------------------------------------------------
# Kernel 2b (ref projection): glimpse + pointer Conv1d(k=1) projections of the
# encoder context, fused into one [L*B,H]x[H,2H] matmul.  Hoisted out of the
# decoder so step 0 of the decode loop carries no extra matmul, and the decoder
# never holds ctx resident.  Emits decoder-friendly [B,L,H] bf16 layouts.
# ----------------------------------------------------------------------------
def refproj_kernel(ctx_ref, wref_ref, bref_ref, eg_ref, ep_ref):
    L, B, H = ctx_ref.shape
    ctx = ctx_ref[...].reshape(L * B, H)                                # bf16
    egp = (jnp.dot(ctx, wref_ref[...], preferred_element_type=jnp.float32)
           + bref_ref[...]).reshape(L, B, 2 * H)
    egp = jnp.transpose(egp, (1, 0, 2))                                 # [B,L,2H]
    eg_ref[...] = egp[:, :, 0:H].astype(jnp.bfloat16)
    ep_ref[...] = egp[:, :, H:2 * H].astype(jnp.bfloat16)


def run_refproj(ctx_lb, w_ref, b_ref):
    L, B, H = ctx_lb.shape
    vmem = pl.BlockSpec(memory_space=pltpu.MemorySpace.VMEM)
    return pl.pallas_call(
        refproj_kernel,
        in_specs=[vmem] * 3,
        out_specs=[vmem] * 2,
        out_shape=[jax.ShapeDtypeStruct((B, L, H), jnp.bfloat16),
                   jax.ShapeDtypeStruct((B, L, H), jnp.bfloat16)],
        compiler_params=pltpu.CompilerParams(vmem_limit_bytes=64 * 1024 * 1024),
    )(ctx_lb, w_ref, b_ref)


# ----------------------------------------------------------------------------
# Kernel 3 (fused decoder): the entire decode loop in one pallas_call.
# Per grid step: LSTM cell + n_glimpses glimpse attn + pointer attn + masking
# + exact softmax + Gumbel-max sampling (host-precomputed noise) + state /
# mask / next-input update + lane-dense idx / selected-prob writes.
# ----------------------------------------------------------------------------
def decoder_kernel(gum_ref,
                   x1e_ref, x2e_ref, eg_ref, ep_ref,
                   hT_ref, cT_ref, din0_ref,
                   wdec_ref, bdec_ref,
                   wqg_ref, bqg_ref, vg_ref, wqp_ref, bqp_ref, vp_ref,
                   probs_ref, idxs_ref, selp_ref,
                   xh_s, cx_s, mask_s,
                   *, n_glimpses, use_tanh, C):
    B, L = mask_s.shape
    H = cx_s.shape[1]
    E = x1e_ref.shape[2]
    E2 = 2 * E
    t = pl.program_id(0)

    @pl.when(t == 0)
    def _():
        xh_s[:, 0:E2] = din0_ref[...]          # decoder input slot
        xh_s[:, E2:E2 + H] = hT_ref[...]       # hidden-state slot
        cx_s[...] = cT_ref[...]
        mask_s[...] = jnp.zeros_like(mask_s)

    # --- LSTM cell: one stacked matmul over the persistent [din | h] scratch ---
    gates = (jnp.dot(xh_s[...].astype(jnp.bfloat16), wdec_ref[...],
                     preferred_element_type=jnp.float32) + bdec_ref[...])  # [B,4H]
    ig = _sigmoid(gates[:, 0:H])
    fg = _sigmoid(gates[:, H:2 * H])
    gg = jnp.tanh(gates[:, 2 * H:3 * H])
    og = _sigmoid(gates[:, 3 * H:4 * H])
    cy = fg * cx_s[...] + ig * gg
    hy = og * jnp.tanh(cy)
    cx_s[...] = cy

    mask = mask_s[...]                                                   # [B,L]

    def masked_softmax(u):
        um = jnp.where(mask > 0.5, jnp.float32(NEG_BIG), u)
        m = jnp.max(um, axis=-1, keepdims=True)
        ex = jnp.exp(um - m)
        p = ex / jnp.sum(ex, axis=-1, keepdims=True)     # exact recip (EUP slot)
        return p, um

    # resident bf16 refs; tanh/softmax math kept f32 (portable to v5e — its
    # VPU/EUP have no bf16).  On v6e/v7x the tanh could run in bf16.
    e_g = eg_ref[...].astype(jnp.float32)                                # [B,L,H]
    e_p = ep_ref[...].astype(jnp.float32)
    vg = vg_ref[...][:, None, :]                                         # [1,1,H]
    vp = vp_ref[...][:, None, :]

    g_l = hy
    for _ in range(n_glimpses):
        q = (jnp.dot(g_l.astype(jnp.bfloat16), wqg_ref[...],
                     preferred_element_type=jnp.float32) + bqg_ref[...])
        u = jnp.sum(jnp.tanh(q[:, None, :] + e_g) * vg, axis=-1)         # [B,L]
        p, _ = masked_softmax(u)
        g_l = jnp.sum(p[:, :, None] * e_g, axis=1)                       # [B,H]

    q = (jnp.dot(g_l.astype(jnp.bfloat16), wqp_ref[...],
                 preferred_element_type=jnp.float32) + bqp_ref[...])
    u = jnp.sum(jnp.tanh(q[:, None, :] + e_p) * vp, axis=-1)             # [B,L]
    if use_tanh:
        u = jnp.float32(C) * jnp.tanh(u)
    probs, u_masked = masked_softmax(u)
    probs_ref[0] = probs

    # --- stochastic decode: Gumbel-max over masked logits (noise from host) ----
    score = u_masked + gum_ref[0]                                        # [B,L]
    maxv = jnp.max(score, axis=-1, keepdims=True)
    lane = jax.lax.broadcasted_iota(jnp.int32, (B, L), 1)
    idx = jnp.min(jnp.where(score >= maxv, lane, jnp.int32(L)), axis=-1)  # [B]
    idxs_ref[pl.ds(t, 1), :] = idx[None, :]                # lane-dense [S,B] row

    # --- selected probability (replaces S wrapper-side gathers), mask, input ---
    # TODO(synk): reference resamples once on a CUDA-multinomial race condition;
    # masked logits here are -1e30 so a repeat selection cannot occur.
    onehot = (lane == idx[:, None]).astype(jnp.float32)                  # [B,L]
    selp_ref[pl.ds(t, 1), :] = jnp.sum(onehot * probs, axis=-1)[None, :]
    mask_s[...] = jnp.maximum(mask, onehot)
    sels = jnp.sum(onehot[:, :, None] * x2e_ref[...].astype(jnp.float32),
                   axis=1)                                               # [B,E]
    # next decoder input = concat(x1e[t], sels), written straight into the
    # persistent xh scratch (no per-step lane concat on the critical path)
    xh_s[:, 0:E] = x1e_ref[0].astype(jnp.float32)
    xh_s[:, E:E2] = sels
    xh_s[:, E2:E2 + H] = hy


def run_decoder(gumbel, x1e_lb, x2e, e_g, e_p, hT, cT, din0,
                w_dec, b_dec, wq_g, bq_g, v_g, wq_p, bq_p, v_p,
                *, n_glimpses, use_tanh, C):
    S, B, L = gumbel.shape
    E = x1e_lb.shape[2]
    H = hT.shape[1]
    kern = functools.partial(decoder_kernel, n_glimpses=n_glimpses,
                             use_tanh=use_tanh, C=C)

    def res(shape):  # resident (constant block index -> fetched once)
        n = len(shape)
        return pl.BlockSpec(shape, lambda t, n=n: (0,) * n)

    in_specs = [
        pl.BlockSpec((1, B, L), lambda t: (t, 0, 0)),   # gumbel noise, per step
        pl.BlockSpec((1, B, E), lambda t: (t, 0, 0)),   # x1e[t], per step
        res((B, L, E)),                                 # x2e (bf16)
        res((B, L, H)), res((B, L, H)),                 # e_g, e_p (bf16)
        res((B, H)), res((B, H)),                       # hT, cT
        res((B, 2 * E)),                                # dec_in_0
        res(w_dec.shape), res(b_dec.shape),
        res(wq_g.shape), res(bq_g.shape), res(v_g.shape),
        res(wq_p.shape), res(bq_p.shape), res(v_p.shape),
    ]
    out_specs = [
        pl.BlockSpec((1, B, L), lambda t: (t, 0, 0)),   # full probs per step
        pl.BlockSpec((S, B), lambda t: (0, 0)),         # idxs, resident [S,B]
        pl.BlockSpec((S, B), lambda t: (0, 0)),         # selected prob [S,B]
    ]
    scratch = [
        pltpu.VMEM((B, 2 * E + H), jnp.float32),        # xh = [din | hx]
        pltpu.VMEM((B, H), jnp.float32),                # cx
        pltpu.VMEM((B, L), jnp.float32),                # selection mask
    ]
    return pl.pallas_call(
        kern,
        grid=(S,),
        in_specs=in_specs,
        out_specs=out_specs,
        scratch_shapes=scratch,
        out_shape=(jax.ShapeDtypeStruct((S, B, L), jnp.float32),
                   jax.ShapeDtypeStruct((S, B), jnp.int32),
                   jax.ShapeDtypeStruct((S, B), jnp.float32)),
        compiler_params=pltpu.CompilerParams(
            dimension_semantics=("arbitrary",),
            vmem_limit_bytes=64 * 1024 * 1024),
    )(gumbel, x1e_lb, x2e, e_g, e_p, hT, cT, din0,
      w_dec, b_dec, wq_g, bq_g, v_g, wq_p, bq_p, v_p)


# ----------------------------------------------------------------------------
# Deterministic parameter init (shapes follow the PyTorch module __init__)
# ----------------------------------------------------------------------------
def init_params(key, *, n_nodes, input_dim, embedding_dim, hidden_dim):
    E, H, N = embedding_dim, hidden_dim, n_nodes
    keys = iter(jax.random.split(key, 32))

    def u(shape, fan_in):
        s = 1.0 / math.sqrt(fan_in)
        return jax.random.uniform(next(keys), shape, jnp.float32, -s, s)

    p = {}
    p['W_emb'] = u((input_dim, E), input_dim)
    p['b_emb'] = u((1, E), input_dim)
    # Encoder nn.LSTM(n_nodes, hidden_dim) + learnable init state
    p['W_ih_enc'] = u((N, 4 * H), H)
    p['b_ih_enc'] = u((1, 4 * H), H)
    p['W_hh_enc'] = u((H, 4 * H), H)
    p['b_hh_enc'] = u((1, 4 * H), H)
    p['enc_h0'] = u((1, H), H)
    p['enc_c0'] = u((1, H), H)
    # Decoder LSTM cell: Linear(2E, 4H) + Linear(H, 4H)
    p['W_ih_dec'] = u((2 * E, 4 * H), 2 * E)
    p['b_ih_dec'] = u((1, 4 * H), 2 * E)
    p['W_hh_dec'] = u((H, 4 * H), H)
    p['b_hh_dec'] = u((1, 4 * H), H)
    # Glimpse attention (Linear(H,H), Conv1d(H,H,1), v)
    p['Wq_g'] = u((H, H), H); p['bq_g'] = u((1, H), H)
    p['Wref_g'] = u((H, H), H); p['bref_g'] = u((1, H), H)
    p['v_g'] = u((1, H), H)
    # Pointer attention
    p['Wq_p'] = u((H, H), H); p['bq_p'] = u((1, H), H)
    p['Wref_p'] = u((H, H), H); p['bref_p'] = u((1, H), H)
    p['v_p'] = u((1, H), H)
    # Trainable initial decoder input
    p['dec_in_0'] = u((1, 2 * E), 2 * E)
    return p


# ----------------------------------------------------------------------------
# Full forward.  Only thin glue stays in plain JAX: weight concat / bf16 casts,
# the Gumbel noise draw, and the final per-step action gathers required by the
# reference output signature.  No wrapper transposes of kernel tensors, no
# per-step probability gathers.
# ----------------------------------------------------------------------------
def matching_nco_forward(params, inputs, *, n_glimpses, use_tanh, C,
                         max_decoding_len, is_train, sample_key):
    B, D_in, twoL = inputs.shape
    L = twoL // 2
    S = max_decoding_len
    assert S <= L, "decoding longer than sourceL would fully mask the softmax"

    bf16 = jnp.bfloat16
    inputs_f32 = inputs.astype(jnp.float32)

    # fold / concat / cast weights once (cheap, outside the hot path)
    w_emb = params['W_emb'].astype(bf16)
    w_ih_enc = params['W_ih_enc'].astype(bf16)
    w_hh_enc = params['W_hh_enc'].astype(bf16)
    b_enc = params['b_ih_enc'] + params['b_hh_enc']
    w_dec = jnp.concatenate([params['W_ih_dec'], params['W_hh_dec']],
                            axis=0).astype(bf16)                   # [(2E+H),4H]
    b_dec = params['b_ih_dec'] + params['b_hh_dec']
    w_ref = jnp.concatenate([params['Wref_g'], params['Wref_p']],
                            axis=1).astype(bf16)                   # [H, 2H]
    b_ref = jnp.concatenate([params['bref_g'], params['bref_p']], axis=1)
    wq_g = params['Wq_g'].astype(bf16)
    wq_p = params['Wq_p'].astype(bf16)

    # kernel 1: embeddings + fused bmm + hoisted encoder input gates
    x1e_lb, x2e, xg_lb = prep_embed_fuse(inputs_f32, w_emb, params['b_emb'],
                                         w_ih_enc, b_enc)

    # kernel 2: encoder LSTM recurrence
    h0 = jnp.tile(params['enc_h0'], (B, 1))
    c0 = jnp.tile(params['enc_c0'], (B, 1))
    ctx_lb, hT, cT = run_encoder(xg_lb, h0, c0, w_hh_enc)

    # kernel 2b: glimpse/pointer reference projections (off the decode loop)
    e_g, e_p = run_refproj(ctx_lb, w_ref, b_ref)

    # kernel 3: fused decode loop (stochastic, Gumbel-max with host noise)
    dec_in0 = jnp.tile(params['dec_in_0'], (B, 1))                 # [B, 2E]
    gumbel = jax.random.gumbel(sample_key, (S, B, L), jnp.float32)
    probs_all, idxs_all, selp_all = run_decoder(
        gumbel, x1e_lb, x2e, e_g, e_p, hT, cT, dec_in0,
        w_dec, b_dec, wq_g, params['bq_g'], params['v_g'],
        wq_p, params['bq_p'], params['v_p'],
        n_glimpses=n_glimpses, use_tanh=use_tanh, C=C)

    # reference output signature
    barange = jnp.arange(B)
    inputs_x2 = jnp.transpose(inputs[:, :, L:2 * L], (0, 2, 1))    # [B, L, D]
    idxs_list = [idxs_all[s] for s in range(S)]
    actions = [inputs_x2[barange, idxs_list[s], :] for s in range(S)]
    if is_train:
        probs_out = [selp_all[s] for s in range(S)]    # selected prob, in-kernel
    else:
        probs_out = [probs_all[s] for s in range(S)]
    return probs_out, actions, idxs_list, probs_all


if __name__ == "__main__":
    key = jax.random.PRNGKey(0)
    pkey, ikey, gkey = jax.random.split(key, 3)

    # small shapes: batch=2, input_dim=4, sourceL=n_nodes=8, embedding=8, hidden=32
    B, D_in, L = 2, 4, 8
    E, H = 8, 32
    n_glimpses = 1
    use_tanh = True
    tanh_exploration = 10.0
    max_decoding_len = L

    params = init_params(pkey, n_nodes=L, input_dim=D_in,
                         embedding_dim=E, hidden_dim=H)
    inputs = jax.random.normal(ikey, (B, D_in, 2 * L), jnp.float32)

    out = matching_nco_forward(params, inputs,
                               n_glimpses=n_glimpses, use_tanh=use_tanh,
                               C=tanh_exploration,
                               max_decoding_len=max_decoding_len,
                               is_train=True, sample_key=gkey)
    jax.block_until_ready(out)
    print("KERNEL_OK")
</pallas_src>

<mosaic_0001>
module attributes {stable_mosaic.version = 11 : i64} {
  func.func @prep_kernel(%arg0: memref<2x4x16xf32, #tpu.memory_space<vmem>>, %arg1: memref<4x8xbf16, #tpu.memory_space<vmem>>, %arg2: memref<1x8xf32, #tpu.memory_space<vmem>>, %arg3: memref<8x128xbf16, #tpu.memory_space<vmem>>, %arg4: memref<1x128xf32, #tpu.memory_space<vmem>>, %arg5: memref<8x2x8xbf16, #tpu.memory_space<vmem>>, %arg6: memref<2x8x8xbf16, #tpu.memory_space<vmem>>, %arg7: memref<8x2x128xf32, #tpu.memory_space<vmem>>) attributes {dimension_semantics = [], scalar_prefetch = 0 : i64, scratch_operands = 0 : i64, tpu.core_type = #tpu.core_type<tc>} {
    %c0 = arith.constant 0 : index
    %c0_0 = arith.constant 0 : index
    %c0_1 = arith.constant 0 : index
    %0 = vector.load %arg0[%c0, %c0_0, %c0_1] : memref<2x4x16xf32, #tpu.memory_space<vmem>>, vector<2x4x16xf32>
    %1 = tpu.transpose %0, [0, 2, 1] : vector<2x4x16xf32> -> vector<2x16x4xf32>
    %2 = vector.shape_cast %1 : vector<2x16x4xf32> to vector<32x4xf32>
    %3 = arith.truncf %2 : vector<32x4xf32> to vector<32x4xbf16>
    %c0_2 = arith.constant 0 : index
    %c0_3 = arith.constant 0 : index
    %4 = vector.load %arg1[%c0_2, %c0_3] : memref<4x8xbf16, #tpu.memory_space<vmem>>, vector<4x8xbf16>
    %cst = arith.constant dense<0.000000e+00> : vector<32x8xf32>
    %5 = tpu.matmul %3, %4, %cst {dimension_numbers = #tpu.dot_dimension_numbers<[1], [0], [0], [1], [0, 0, 1, 1], [], []>} : vector<32x4xbf16>, vector<4x8xbf16>, vector<32x8xf32> -> vector<32x8xf32>
    %c0_4 = arith.constant 0 : index
    %c0_5 = arith.constant 0 : index
    %6 = vector.load %arg2[%c0_4, %c0_5] : memref<1x8xf32, #tpu.memory_space<vmem>>, vector<1x8xf32>
    %7 = vector.broadcast %6 : vector<1x8xf32> to vector<32x8xf32>
    %8 = arith.addf %5, %7 : vector<32x8xf32>
    %cst_6 = arith.constant 0.000000e+00 : f32
    %9 = vector.broadcast %cst_6 : f32 to vector<32x8xf32>
    %10 = arith.cmpf oge, %8, %9 : vector<32x8xf32>
    %cst_7 = arith.constant 0.00999999977 : f32
    %11 = vector.broadcast %cst_7 : f32 to vector<32x8xf32>
    %12 = arith.mulf %11, %8 : vector<32x8xf32>
    %13 = arith.select %10, %8, %12 : vector<32x8xi1>, vector<32x8xf32>
    %14 = vector.shape_cast %13 : vector<32x8xf32> to vector<2x16x8xf32>
    %15 = vector.extract_strided_slice %14 {offsets = [0, 0, 0], sizes = [2, 8, 8], strides = [1, 1, 1]} : vector<2x16x8xf32> to vector<2x8x8xf32>
    %16 = vector.extract_strided_slice %14 {offsets = [0, 8, 0], sizes = [2, 8, 8], strides = [1, 1, 1]} : vector<2x16x8xf32> to vector<2x8x8xf32>
    %17 = tpu.transpose %15, [1, 0, 2] : vector<2x8x8xf32> -> vector<8x2x8xf32>
    %18 = arith.truncf %17 : vector<8x2x8xf32> to vector<8x2x8xbf16>
    %c0_8 = arith.constant 0 : index
    %c0_9 = arith.constant 0 : index
    %c0_10 = arith.constant 0 : index
    %19 = vector.load %arg5[%c0_8, %c0_9, %c0_10] : memref<8x2x8xbf16, #tpu.memory_space<vmem>>, vector<8x2x8xbf16>
    tpu.vector_store %arg5[%c0_8, %c0_9, %c0_10], %18 {strides = array<i32>} : memref<8x2x8xbf16, #tpu.memory_space<vmem>>, vector<8x2x8xbf16>,
    %20 = arith.truncf %16 : vector<2x8x8xf32> to vector<2x8x8xbf16>
    %c0_11 = arith.constant 0 : index
    %c0_12 = arith.constant 0 : index
    %c0_13 = arith.constant 0 : index
    %21 = vector.load %arg6[%c0_11, %c0_12, %c0_13] : memref<2x8x8xbf16, #tpu.memory_space<vmem>>, vector<2x8x8xbf16>
    tpu.vector_store %arg6[%c0_11, %c0_12, %c0_13], %20 {strides = array<i32>} : memref<2x8x8xbf16, #tpu.memory_space<vmem>>, vector<2x8x8xbf16>,
    %22 = arith.truncf %15 : vector<2x8x8xf32> to vector<2x8x8xbf16>
    %23 = arith.truncf %16 : vector<2x8x8xf32> to vector<2x8x8xbf16>
    "tpu.trace_start"() <{level = 10 : i32, message = "ble,bme->blm"}> : () -> ()
    %cst_14 = arith.constant dense<0.000000e+00> : vector<2x8x8xf32>
    %24 = tpu.matmul %22, %23, %cst_14 {dimension_numbers = #tpu.dot_dimension_numbers<[2], [2], [1], [1], [0, 0, 0, 1, 1, 1], [0], [0]>} : vector<2x8x8xbf16>, vector<2x8x8xbf16>, vector<2x8x8xf32> -> vector<2x8x8xf32>
    "tpu.trace_stop"() : () -> ()
    %25 = vector.shape_cast %24 : vector<2x8x8xf32> to vector<16x8xf32>
    %26 = arith.truncf %25 : vector<16x8xf32> to vector<16x8xbf16>
    %c0_15 = arith.constant 0 : index
    %c0_16 = arith.constant 0 : index
    %27 = vector.load %arg3[%c0_15, %c0_16] : memref<8x128xbf16, #tpu.memory_space<vmem>>, vector<8x128xbf16>
    %cst_17 = arith.constant dense<0.000000e+00> : vector<16x128xf32>
    %28 = tpu.matmul %26, %27, %cst_17 {dimension_numbers = #tpu.dot_dimension_numbers<[1], [0], [0], [1], [0, 0, 1, 1], [], []>} : vector<16x8xbf16>, vector<8x128xbf16>, vector<16x128xf32> -> vector<16x128xf32>
    %c0_18 = arith.constant 0 : index
    %c0_19 = arith.constant 0 : index
    %29 = vector.load %arg4[%c0_18, %c0_19] : memref<1x128xf32, #tpu.memory_space<vmem>>, vector<1x128xf32>
    %30 = vector.broadcast %29 : vector<1x128xf32> to vector<16x128xf32>
    %31 = arith.addf %28, %30 : vector<16x128xf32>
    %32 = vector.shape_cast %31 : vector<16x128xf32> to vector<2x8x128xf32>
    %33 = tpu.transpose %32, [1, 0, 2] : vector<2x8x128xf32> -> vector<8x2x128xf32>
    %c0_20 = arith.constant 0 : index
    %c0_21 = arith.constant 0 : index
    %c0_22 = arith.constant 0 : index
    %34 = vector.load %arg7[%c0_20, %c0_21, %c0_22] : memref<8x2x128xf32, #tpu.memory_space<vmem>>, vector<8x2x128xf32>
    tpu.vector_store %arg7[%c0_20, %c0_21, %c0_22], %33 {strides = array<i32>} : memref<8x2x128xf32, #tpu.memory_space<vmem>>, vector<8x2x128xf32>,
    return
  }
}

</mosaic_0001>

<llo_original>
// kernel: tpu_custom_call.1
$region0: #{tpu_custom_call.1}
  #allocation0 [shape = 'u32[]', space=smem, size = 0x4, offset = 0x4, fixed_abs, tag = 'smem constant byte address 0x4 - core index']
  #allocation1 [shape = 'u32[72,128]{1,0:T(1,128)}', space=vmem, size = 0x9000, scoped, tag = 'internal scratch']
  %s0 = inlined_call_operand.hbm [shape: f32[2,4,16], index: 0, kind: input, shape index: {}]
  %s1 = inlined_call_operand.hbm [shape: bf16[4,8], index: 1, kind: input, shape index: {}]
  %s2 = inlined_call_operand.vmem [shape: f32[1,8], index: 2, kind: input, shape index: {}]
  %s3 = inlined_call_operand.hbm [shape: bf16[8,128], index: 3, kind: input, shape index: {}]
  %s4 = inlined_call_operand.vmem [shape: f32[1,128], index: 4, kind: input, shape index: {}]
  %s5 = inlined_call_operand.hbm [shape: bf16[8,2,8], index: 5, kind: output, shape index: {0}]
  %s6 = inlined_call_operand.hbm [shape: bf16[2,8,8], index: 6, kind: output, shape index: {1}]
  %s7 = inlined_call_operand.hbm [shape: f32[8,2,128], index: 7, kind: output, shape index: {2}]
  %8 = xla_tuple %s5, %s6, %s7
  %s9 = sld [smem:[#allocation0]]
  $region58: #{tpu_custom_call.1} parent=0
    _
  %s11 = ssub.s32 1, %s9
  %s12 = scalar_select 0, %s11, %s9
  $region1: #{tpu_custom_call.1} parent=0
    #allocation2 [shape = 'u8[4096]{0}', space=vmem, size = 0x1000, scoped, tag = 'input window, operand 0, single buffered']
    #allocation3 [shape = 's32[1]{0}', space=sflag, size = 0x4, scoped, tag = 'scoped memory for tpu_custom_call.1']
    #allocation4 [shape = 's32[1]{0}', space=sflag, size = 0x4, scoped, tag = 'scoped memory for tpu_custom_call.1']
    #allocation5 [shape = 'u8[1024]{0}', space=vmem, size = 0x400, scoped, tag = 'input window, operand 1, single buffered']
    #allocation6 [shape = 's32[1]{0}', space=sflag, size = 0x4, scoped, tag = 'scoped memory for tpu_custom_call.1']
    #allocation7 [shape = 'u8[2048]{0}', space=vmem, size = 0x800, scoped, tag = 'input window, operand 3, single buffered']
    #allocation8 [shape = 'u8[4096]{0}', space=vmem, size = 0x1000, scoped, tag = 'output window, operand 0, single buffered']
    #allocation9 [shape = 'u8[4096]{0}', space=vmem, size = 0x1000, scoped, tag = 'output window, operand 1, single buffered']
    #allocation10 [shape = 's32[1]{0}', space=sflag, size = 0x4, scoped, tag = 'scoped memory for tpu_custom_call.1']
    #allocation11 [shape = 'u8[8192]{0}', space=vmem, size = 0x2000, scoped, tag = 'output window, operand 2, single buffered']
    %13 = vsyncpa [#allocation3], 0
    %14 = vsyncpa [#allocation6], 0
    %15 = vsyncpa [#allocation4], 0
    %16 = vsyncpa [#allocation10], 0
    // Predicated region
    $region2: #{tpu_custom_call.1} parent=1 // pred_check
      _
    $region3: #{tpu_custom_call.1} parent=1 // pred_check_branch
      %18 = sbr.rel (0) target = $region5
    $region4: #{tpu_custom_call.1} parent=1 // pred_region
      %20 = vsyncadd [#allocation3], 0
      %s21 = sshll.u32 %s0, 4
      %s22 = int_to_ptr.hbm [resolvable:$true] %s21
      %s23 = sshll.u32 [#allocation2], 4
      %s24 = int_to_ptr.vmem [resolvable:$true] %s23
      %29 = dma.hbm_to_vmem [thread:$0]  %s22, 128, %s24, [#allocation3], 64, 64, 4
    $region5: #{tpu_custom_call.1} parent=1 // pred_fallthru
      _
    // Predicated region
    $region6: #{tpu_custom_call.1} parent=1 // pred_check
      _
    $region7: #{tpu_custom_call.1} parent=1 // pred_check_branch
      %31 = sbr.rel (0) target = $region9
    $region8: #{tpu_custom_call.1} parent=1 // pred_region
      %33 = vsyncadd [#allocation6], 0
      %s35 = sshll.u32 %s1, 4
      %s36 = int_to_ptr.hbm [resolvable:$true] %s35
      %s37 = sshll.u32 [#allocation5], 4
      %s38 = int_to_ptr.vmem [resolvable:$true] %s37
      %40 = dma.hbm_to_vmem [thread:$0]  %s36, 32, %s38, [#allocation6]
    $region9: #{tpu_custom_call.1} parent=1 // pred_fallthru
      _
    // Predicated region
    $region10: #{tpu_custom_call.1} parent=1 // pred_check
      _
    $region11: #{tpu_custom_call.1} parent=1 // pred_check_branch
      %42 = sbr.rel (0) target = $region13
    $region12: #{tpu_custom_call.1} parent=1 // pred_region
      _
    $region13: #{tpu_custom_call.1} parent=1 // pred_fallthru
      _
    // Predicated region
    $region14: #{tpu_custom_call.1} parent=1 // pred_check
      _
    $region15: #{tpu_custom_call.1} parent=1 // pred_check_branch
      %44 = sbr.rel (0) target = $region17
    $region16: #{tpu_custom_call.1} parent=1 // pred_region
      %46 = vsyncadd [#allocation6], 0
      %s48 = sshll.u32 %s3, 4
      %s49 = int_to_ptr.hbm [resolvable:$true] %s48
      %s50 = sshll.u32 [#allocation7], 4
      %s51 = int_to_ptr.vmem [resolvable:$true] %s50
      %53 = dma.hbm_to_vmem [thread:$0]  %s49, 64, %s51, [#allocation6]
    $region17: #{tpu_custom_call.1} parent=1 // pred_fallthru
      _
    // Predicated region
    $region18: #{tpu_custom_call.1} parent=1 // pred_check
      _
    $region19: #{tpu_custom_call.1} parent=1 // pred_check_branch
      %55 = sbr.rel (0) target = $region21
    $region20: #{tpu_custom_call.1} parent=1 // pred_region
      _
    $region21: #{tpu_custom_call.1} parent=1 // pred_fallthru
      _
    // Predicated region
    $region22: #{tpu_custom_call.1} parent=1 // pred_check
      _
    $region23: #{tpu_custom_call.1} parent=1 // pred_check_branch
      %57 = sbr.rel (0) target = $region25
    $region24: #{tpu_custom_call.1} parent=1 // pred_region
      %59 = dma.done [#allocation3], 128
    $region25: #{tpu_custom_call.1} parent=1 // pred_fallthru
      _
    // Predicated region
    $region26: #{tpu_custom_call.1} parent=1 // pred_check
      _
    $region27: #{tpu_custom_call.1} parent=1 // pred_check_branch
      %61 = sbr.rel (0) target = $region29
    $region28: #{tpu_custom_call.1} parent=1 // pred_region
      %63 = dma.done [#allocation6], 32
    $region29: #{tpu_custom_call.1} parent=1 // pred_fallthru
      _
    // Predicated region
    $region30: #{tpu_custom_call.1} parent=1 // pred_check
      _
    $region31: #{tpu_custom_call.1} parent=1 // pred_check_branch
      %65 = sbr.rel (0) target = $region33
    $region32: #{tpu_custom_call.1} parent=1 // pred_region
      %67 = dma.done [#allocation6], 64
    $region33: #{tpu_custom_call.1} parent=1 // pred_fallthru
      _
    %v69 = vld [vmem:[#allocation2] sm:$0xf]
    %v70 = vld [vmem:[#allocation2 + $0x4] sm:$0xf]
    %71 = vxpose.xlu0.b32.start [1/16] %v69, 128
    %72 = vxpose.xlu0.b32.cont [2/16] 0.0, 128
    %73 = vxpose.xlu0.b32.cont [3/16] 0.0, 128
    %74 = vxpose.xlu0.b32.cont [4/16] 0.0, 128
    %75 = vxpose.xlu0.b32.cont [5/16] 0.0, 128
    %76 = vxpose.xlu0.b32.cont [6/16] 0.0, 128
    %77 = vxpose.xlu0.b32.cont [7/16] 0.0, 128
    %78 = vxpose.xlu0.b32.cont [8/16] 0.0, 128
    %79 = vxpose.xlu0.b32.cont [9/16] 0.0, 128
    %80 = vxpose.xlu0.b32.cont [10/16] 0.0, 128
    %81 = vxpose.xlu0.b32.cont [11/16] 0.0, 128
    %82 = vxpose.xlu0.b32.cont [12/16] 0.0, 128
    %83 = vxpose.xlu0.b32.cont [13/16] 0.0, 128
    %84 = vxpose.xlu0.b32.cont [14/16] 0.0, 128
    %85 = vxpose.xlu0.b32.cont [15/16] 0.0, 128
    %86 = vxpose.xlu0.b32.end [16/16] 0.0, 128
    %v87 = vpop.trf.xlu0
    %v88 = vpop.trf.xlu0
    %v89 = vpop.trf.xlu0
    %v90 = vpop.trf.xlu0
    %v91 = vpop.trf.xlu0
    %v92 = vpop.trf.xlu0
    %v93 = vpop.trf.xlu0
    %v94 = vpop.trf.xlu0
    %v95 = vpop.trf.xlu0
    %v96 = vpop.trf.xlu0
    %v97 = vpop.trf.xlu0
    %v98 = vpop.trf.xlu0
    %v99 = vpop.trf.xlu0
    %v100 = vpop.trf.xlu0
    %v101 = vpop.trf.xlu0
    %v102 = vpop.trf.xlu0
    %103 = vxpose.xlu0.b32.start [1/16] %v70, 128
    %104 = vxpose.xlu0.b32.cont [2/16] 0.0, 128
    %105 = vxpose.xlu0.b32.cont [3/16] 0.0, 128
    %106 = vxpose.xlu0.b32.cont [4/16] 0.0, 128
    %107 = vxpose.xlu0.b32.cont [5/16] 0.0, 128
    %108 = vxpose.xlu0.b32.cont [6/16] 0.0, 128
    %109 = vxpose.xlu0.b32.cont [7/16] 0.0, 128
    %110 = vxpose.xlu0.b32.cont [8/16] 0.0, 128
    %111 = vxpose.xlu0.b32.cont [9/16] 0.0, 128
    %112 = vxpose.xlu0.b32.cont [10/16] 0.0, 128
    %113 = vxpose.xlu0.b32.cont [11/16] 0.0, 128
    %114 = vxpose.xlu0.b32.cont [12/16] 0.0, 128
    %115 = vxpose.xlu0.b32.cont [13/16] 0.0, 128
    %116 = vxpose.xlu0.b32.cont [14/16] 0.0, 128
    %117 = vxpose.xlu0.b32.cont [15/16] 0.0, 128
    %118 = vxpose.xlu0.b32.end [16/16] 0.0, 128
    %v119 = vpop.trf.xlu0
    %v120 = vpop.trf.xlu0
    %v121 = vpop.trf.xlu0
    %v122 = vpop.trf.xlu0
    %v123 = vpop.trf.xlu0
    %v124 = vpop.trf.xlu0
    %v125 = vpop.trf.xlu0
    %v126 = vpop.trf.xlu0
    %v127 = vpop.trf.xlu0
    %v128 = vpop.trf.xlu0
    %v129 = vpop.trf.xlu0
    %v130 = vpop.trf.xlu0
    %v131 = vpop.trf.xlu0
    %v132 = vpop.trf.xlu0
    %v133 = vpop.trf.xlu0
    %v134 = vpop.trf.xlu0
    %v135 = vpack.c.bf16 %v88, %v87
    %v136 = vpack.c.bf16 %v120, %v119
    %v137 = vld [vmem:[#allocation5] sm:$0x3]
    %v138 = vld [vmem:[%s2] sm:$0x1]
    %v140 = vperm.slane %v138, 0
    %vm142 = vcmask 31744
    %v144 = vsel %vm142, %v135, 0
    %v147 = vsel %vm142, %v136, 0
    %vm149 = vcmask 1041408
    %v151 = vsel %vm149, %v137, 0
    %153 = vmatpush.bf16.msra.mxu0 0
    %154 = vmatpush.bf16.msra.mxu0 0
    %155 = vmatpush.bf16.msra.mxu0 0
    %156 = vmatpush.bf16.msra.mxu0 0
    %157 = vmatpush.bf16.msra.mxu0 0
    %158 = vmatpush.bf16.msra.mxu0 0
    %159 = vmatpush.bf16.msra.mxu0 0
    %160 = vmatpush.bf16.msra.mxu0 %v151
    %161 = vmatmul.bf16.gmra.mxu0 %v144
    %v162 = vpop.f32.mrf.mxu0
    %v163 = vadd.f32 %v140, %v162
    %v164 = vpop.f32.mrf.mxu0
    %v165 = vadd.f32 %v140, %v164
    %166 = vmatmul.bf16.gmra.mxu0 %v147
    %v167 = vpop.f32.mrf.mxu0
    %v168 = vadd.f32 %v140, %v167
    %v169 = vpop.f32.mrf.mxu0
    %v170 = vadd.f32 %v140, %v169
    %171 = vdwg.mxu0
    %vm172 = vcmp.ge.f32.partialorder %v163, 0.0
    %vm173 = vcmp.ge.f32.partialorder %v165, 0.0
    %vm174 = vcmp.ge.f32.partialorder %v168, 0.0
    %vm175 = vcmp.ge.f32.partialorder %v170, 0.0
    %v176 = vmul.f32 %v163, 0.01
    %v177 = vmul.f32 %v165, 0.01
    %v178 = vmul.f32 %v168, 0.01
    %v179 = vmul.f32 %v170, 0.01
    %v180 = vsel %vm172, %v163, %v176
    %v181 = vsel %vm173, %v165, %v177
    %v182 = vsel %vm174, %v168, %v178
    %v183 = vsel %vm175, %v170, %v179
    %v184 = vrot.slane %v180, 4
    %vm185 = vcmask 1047556
    %v186 = vsel %vm185, 0.0, %v184
    %v188 = vunpack.c.l.s4 1983009808
    %v189 = vunpack.c.0.s8 %v188
    %v190 = vperm.slane %v180, %v189
    %v192 = vunpack.c.l.s4 1983009808
    %v193 = vunpack.c.0.s8 %v192
    %v194 = vperm.slane %v186, %v193
    %v195 = vrot.slane %v182, 4
    %v196 = vsel %vm185, 0.0, %v195
    %v198 = vunpack.c.l.s4 1983009808
    %v199 = vunpack.c.0.s8 %v198
    %v200 = vperm.slane %v182, %v199
    %v202 = vunpack.c.l.s4 1983009808
    %v203 = vunpack.c.0.s8 %v202
    %v204 = vperm.slane %v196, %v203
    %v205 = vrot.slane %v200, 4
    %v206 = vsel %vm185, %v205, %v190
    %v207 = vrot.slane %v190, 4
    %v208 = vsel %vm185, %v200, %v207
    %v210 = vunpack.c.l.s4 1934713408
    %v211 = vunpack.c.0.s8 %v210
    %v212 = vperm.slane %v206, %v211
    %v214 = vunpack.c.l.s4 1934713408
    %v215 = vunpack.c.0.s8 %v214
    %v216 = vperm.slane %v208, %v215
    %v217 = vrot.slane %v204, 4
    %v218 = vsel %vm185, %v217, %v194
    %v219 = vrot.slane %v194, 4
    %v220 = vsel %vm185, %v204, %v219
    %v222 = vunpack.c.l.s4 1934713408
    %v223 = vunpack.c.0.s8 %v222
    %v224 = vperm.slane %v218, %v223
    %v226 = vunpack.c.l.s4 1934713408
    %v227 = vunpack.c.0.s8 %v226
    %v228 = vperm.slane %v220, %v227
    %v229 = vrot.slane %v212, 4
    %v230 = vsel %vm185, 0.0, %v229
    %v231 = vrot.slane %v216, 4
    %v232 = vsel %vm185, 0.0, %v231
    %v233 = vrot.slane %v224, 4
    %v234 = vsel %vm185, 0.0, %v233
    %v235 = vrot.slane %v228, 4
    %v236 = vsel %vm185, 0.0, %v235
    %v237 = vpack.c.bf16 %v212, %v212
    %v238 = vpack.c.bf16 %v230, %v230
    %v239 = vpack.c.bf16 %v216, %v216
    %v240 = vpack.c.bf16 %v232, %v232
    %v241 = vpack.c.bf16 %v224, %v224
    %v242 = vpack.c.bf16 %v234, %v234
    %v243 = vpack.c.bf16 %v228, %v228
    %v244 = vpack.c.bf16 %v236, %v236
    %vm245 = vcmask 57344
    %246 = vst.msk [vmem:[#allocation8] sm:$0x1] %vm245, %v237
    %247 = vst.msk [vmem:[#allocation8 + $0x1] sm:$0x1] %vm245, %v238
    %248 = vst.msk [vmem:[#allocation8 + $0x2] sm:$0x1] %vm245, %v239
    %249 = vst.msk [vmem:[#allocation8 + $0x3] sm:$0x1] %vm245, %v240
    %250 = vst.msk [vmem:[#allocation8 + $0x4] sm:$0x1] %vm245, %v241
    %251 = vst.msk [vmem:[#allocation8 + $0x5] sm:$0x1] %vm245, %v242
    %252 = vst.msk [vmem:[#allocation8 + $0x6] sm:$0x1] %vm245, %v243
    %253 = vst.msk [vmem:[#allocation8 + $0x7] sm:$0x1] %vm245, %v244
    %v254 = vpack.c.bf16 %v181, %v181
    %v255 = vpack.c.bf16 %v183, %v183
    %vm256 = vcmask 60416
    %257 = vst.msk [vmem:[#allocation9] sm:$0xf] %vm256, %v254
    %258 = vst.msk [vmem:[#allocation9 + $0x4] sm:$0xf] %vm256, %v255
    %v259 = vpack.c.bf16 %v180, %v180
    %v260 = vpack.c.bf16 %v182, %v182
    %vm261 = vcmask 64512
    %v263 = vsel %vm261, %v259, 0
    %v266 = vsel %vm261, %v254, 0
    %268 = vmatpush.bf16.xpose.msra.mxu0 0
    %269 = vmatpush.bf16.xpose.msra.mxu0 0
    %270 = vmatpush.bf16.xpose.msra.mxu0 0
    %271 = vmatpush.bf16.xpose.msra.mxu0 0
    %272 = vmatpush.bf16.xpose.msra.mxu0 0
    %273 = vmatpush.bf16.xpose.msra.mxu0 0
    %274 = vmatpush.bf16.xpose.msra.mxu0 0
    %275 = vmatpush.bf16.xpose.msra.mxu0 %v266
    %276 = vmatmul.bf16.gmra.mxu0 %v263
    %v277 = vpop.f32.mrf.mxu0
    %v278 = vadd.f32 0.0, %v277
    %v279 = vpop.f32.mrf.mxu0
    %280 = vdwg.mxu0
    %v282 = vsel %vm261, %v260, 0
    %v285 = vsel %vm261, %v255, 0
    %287 = vmatpush.bf16.xpose.msra.mxu0 0
    %288 = vmatpush.bf16.xpose.msra.mxu0 0
    %289 = vmatpush.bf16.xpose.msra.mxu0 0
    %290 = vmatpush.bf16.xpose.msra.mxu0 0
    %291 = vmatpush.bf16.xpose.msra.mxu0 0
    %292 = vmatpush.bf16.xpose.msra.mxu0 0
    %293 = vmatpush.bf16.xpose.msra.mxu0 0
    %294 = vmatpush.bf16.xpose.msra.mxu0 %v285
    %295 = vmatmul.bf16.gmra.mxu0 %v282
    %v296 = vpop.f32.mrf.mxu0
    %v297 = vadd.f32 0.0, %v296
    %v298 = vpop.f32.mrf.mxu0
    %299 = vdwg.mxu0
    %v300 = vpack.c.bf16 %v297, %v278
    %v301 = vld [vmem:[#allocation7] sm:$0xf]
    %v302 = vld [vmem:[%s4] sm:$0x1]
    %v304 = vperm.slane %v302, 0
    %v307 = vsel %vm261, %v300, 0
    %vm309 = vcmask 1043456
    %v311 = vsel %vm309, %v301, 0
    %313 = vmatpush.bf16.msra.mxu0 0
    %314 = vmatpush.bf16.msra.mxu0 0
    %315 = vmatpush.bf16.msra.mxu0 0
    %316 = vmatpush.bf16.msra.mxu0 0
    %317 = vmatpush.bf16.msra.mxu0 0
    %318 = vmatpush.bf16.msra.mxu0 0
    %319 = vmatpush.bf16.msra.mxu0 0
    %320 = vmatpush.bf16.msra.mxu0 %v311
    %321 = vmatmul.bf16.gmra.mxu0 %v307
    %v322 = vpop.f32.mrf.mxu0
    %v323 = vadd.f32 %v304, %v322
    %v324 = vpop.f32.mrf.mxu0
    %v325 = vadd.f32 %v304, %v324
    %326 = vdwg.mxu0
    %v327 = vrot.slane %v323, 4
    %v328 = vsel %vm185, 0.0, %v327
    %v330 = vunpack.c.l.s4 1983009808
    %v331 = vunpack.c.0.s8 %v330
    %v332 = vperm.slane %v323, %v331
    %v334 = vunpack.c.l.s4 1983009808
    %v335 = vunpack.c.0.s8 %v334
    %v336 = vperm.slane %v328, %v335
    %v337 = vrot.slane %v325, 4
    %v338 = vsel %vm185, 0.0, %v337
    %v340 = vunpack.c.l.s4 1983009808
    %v341 = vunpack.c.0.s8 %v340
    %v342 = vperm.slane %v325, %v341
    %v344 = vunpack.c.l.s4 1983009808
    %v345 = vunpack.c.0.s8 %v344
    %v346 = vperm.slane %v338, %v345
    %v347 = vrot.slane %v342, 4
    %v348 = vsel %vm185, %v347, %v332
    %v349 = vrot.slane %v332, 4
    %v350 = vsel %vm185, %v342, %v349
    %v352 = vunpack.c.l.s4 1934713408
    %v353 = vunpack.c.0.s8 %v352
    %v354 = vperm.slane %v348, %v353
    %v356 = vunpack.c.l.s4 1934713408
    %v357 = vunpack.c.0.s8 %v356
    %v358 = vperm.slane %v350, %v357
    %v359 = vrot.slane %v346, 4
    %v360 = vsel %vm185, %v359, %v336
    %v361 = vrot.slane %v336, 4
    %v362 = vsel %vm185, %v346, %v361
    %v364 = vunpack.c.l.s4 1934713408
    %v365 = vunpack.c.0.s8 %v364
    %v366 = vperm.slane %v360, %v365
    %v368 = vunpack.c.l.s4 1934713408
    %v369 = vunpack.c.0.s8 %v368
    %v370 = vperm.slane %v362, %v369
    %v371 = vrot.slane %v354, 4
    %v372 = vsel %vm185, 0.0, %v371
    %v373 = vrot.slane %v358, 4
    %v374 = vsel %vm185, 0.0, %v373
    %v375 = vrot.slane %v366, 4
    %v376 = vsel %vm185, 0.0, %v375
    %v377 = vrot.slane %v370, 4
    %v378 = vsel %vm185, 0.0, %v377
    %379 = vst [vmem:[#allocation11] sm:$0x3] %v354
    %380 = vst [vmem:[#allocation11 + $0x2] sm:$0x3] %v372
    %381 = vst [vmem:[#allocation11 + $0x4] sm:$0x3] %v358
    %382 = vst [vmem:[#allocation11 + $0x6] sm:$0x3] %v374
    %383 = vst [vmem:[#allocation11 + $0x8] sm:$0x3] %v366
    %384 = vst [vmem:[#allocation11 + $0xa] sm:$0x3] %v376
    %385 = vst [vmem:[#allocation11 + $0xc] sm:$0x3] %v370
    %386 = vst [vmem:[#allocation11 + $0xe] sm:$0x3] %v378
    // Predicated region
    $region34: #{tpu_custom_call.1} parent=1 // pred_check
      _
    $region35: #{tpu_custom_call.1} parent=1 // pred_check_branch
      %388 = sbr.rel (0) target = $region37
    $region36: #{tpu_custom_call.1} parent=1 // pred_region
      %390 = vsyncadd [#allocation4], 0
      %s391 = sshll.u32 [#allocation8], 4
      %s392 = int_to_ptr.vmem [resolvable:$true] %s391
      %s393 = sshll.u32 %s5, 4
      %s394 = int_to_ptr.hbm [resolvable:$true] %s393
      %399 = dma.vmem_to_hbm [thread:$0]  %s392, 128, %s394, [#allocation4], 16, 16, 1
    $region37: #{tpu_custom_call.1} parent=1 // pred_fallthru
      _
    // Predicated region
    $region38: #{tpu_custom_call.1} parent=1 // pred_check
      _
    $region39: #{tpu_custom_call.1} parent=1 // pred_check_branch
      %401 = sbr.rel (0) target = $region41
    $region40: #{tpu_custom_call.1} parent=1 // pred_region
      %403 = vsyncadd [#allocation10], 0
      %s404 = sshll.u32 [#allocation9], 4
      %s405 = int_to_ptr.vmem [resolvable:$true] %s404
      %s406 = sshll.u32 %s6, 4
      %s407 = int_to_ptr.hbm [resolvable:$true] %s406
      %412 = dma.vmem_to_hbm [thread:$0]  %s405, 128, %s407, [#allocation10], 64, 64, 4
    $region41: #{tpu_custom_call.1} parent=1 // pred_fallthru
      _
    // Predicated region
    $region42: #{tpu_custom_call.1} parent=1 // pred_check
      _
    $region43: #{tpu_custom_call.1} parent=1 // pred_check_branch
      %414 = sbr.rel (0) target = $region45
    $region44: #{tpu_custom_call.1} parent=1 // pred_region
      %416 = vsyncadd [#allocation10], 0
      %s417 = sshll.u32 [#allocation11], 4
      %s418 = int_to_ptr.vmem [resolvable:$true] %s417
      %s419 = sshll.u32 %s7, 4
      %s420 = int_to_ptr.hbm [resolvable:$true] %s419
      %425 = dma.vmem_to_hbm [thread:$0]  %s418, 256, %s420, [#allocation10], 32, 32, 2
    $region45: #{tpu_custom_call.1} parent=1 // pred_fallthru
      _
    // Predicated region
    $region46: #{tpu_custom_call.1} parent=1 // pred_check
      _
    $region47: #{tpu_custom_call.1} parent=1 // pred_check_branch
      %427 = sbr.rel (0) target = $region49
    $region48: #{tpu_custom_call.1} parent=1 // pred_region
      %429 = dma.done [#allocation4], 128
    $region49: #{tpu_custom_call.1} parent=1 // pred_fallthru
      _
    // Predicated region
    $region50: #{tpu_custom_call.1} parent=1 // pred_check
      _
    $region51: #{tpu_custom_call.1} parent=1 // pred_check_branch
      %431 = sbr.rel (0) target = $region53
    $region52: #{tpu_custom_call.1} parent=1 // pred_region
      %433 = dma.done [#allocation10], 128
    $region53: #{tpu_custom_call.1} parent=1 // pred_fallthru
      _
    // Predicated region
    $region54: #{tpu_custom_call.1} parent=1 // pred_check
      _
    $region55: #{tpu_custom_call.1} parent=1 // pred_check_branch
      %435 = sbr.rel (0) target = $region57
    $region56: #{tpu_custom_call.1} parent=1 // pred_region
      %437 = dma.done [#allocation10], 256
    $region57: #{tpu_custom_call.1} parent=1 // pred_fallthru
      _
    %438 = vsyncpa [#allocation3], 1
    %439 = vsyncpa [#allocation6], 1
    %440 = vsyncpa [#allocation4], 1
    %441 = vsyncpa [#allocation10], 1

</llo_original>
